<compile_context>
chip_gen: v7x
topology: tpu7x:2x2x1
jax: 0.10.0
libtpu: 0.0.40
codegen_flags: <defaults>
</compile_context>

<pallas_src>
import jax
import jax.numpy as jnp
from jax.experimental import pallas as pl
from jax.experimental.pallas import tpu as pltpu

BN_EPS = 1e-5
LEAKY_SLOPE = 0.01


def _round_up(x, m):
    return ((x + m - 1) // m) * m


def glu_kernel(x_ref, wa_ref, wg_ref, ba_ref, bg_ref,
               sca_ref, sha_ref, scg_ref, shg_ref, o_ref):
    x = x_ref[...]
    # Two lane-aligned MXU matmuls (f32 accumulation) instead of one fused
    # [.., 2*out_dim] matmul that would need an in-kernel cross-lane split.
    a = jnp.dot(x, wa_ref[...], preferred_element_type=jnp.float32) + ba_ref[...]
    g = jnp.dot(x, wg_ref[...], preferred_element_type=jnp.float32) + bg_ref[...]
    # leaky_relu (slope 0.01), then eval-mode BN pre-folded to scale/shift.
    a = jnp.where(a > 0, a, LEAKY_SLOPE * a) * sca_ref[...] + sha_ref[...]
    g = jnp.where(g > 0, g, LEAKY_SLOPE * g) * scg_ref[...] + shg_ref[...]
    # dropout is identity in eval mode; gated output.
    o_ref[...] = (a * jax.nn.sigmoid(g)).astype(o_ref.dtype)


def glu_forward(x, w, b, gamma, beta, running_mean, running_var, out_dim,
                *, block_rows=1024):
    n, inp_dim = x.shape

    # ---- parameter preprocessing (outside the kernel, runs once) -----------
    # Fold eval-mode BN into a single per-feature affine.
    scale = gamma * jax.lax.rsqrt(running_var + BN_EPS)
    shift = beta - running_mean * scale
    # Split the fused 2*out_dim dimension into lane-aligned halves.
    w_a, w_g = w[:, :out_dim], w[:, out_dim:]
    b_a, b_g = b[:, :out_dim], b[:, out_dim:]
    sc_a, sc_g = scale[:, :out_dim], scale[:, out_dim:]
    sh_a, sh_g = shift[:, :out_dim], shift[:, out_dim:]
    # bf16 for the dominant HBM streams; epilogue params stay f32.
    x_bf = x.astype(jnp.bfloat16)
    w_a = w_a.astype(jnp.bfloat16)
    w_g = w_g.astype(jnp.bfloat16)

    # ---- tile-size selection (budget against v7x 32 MiB scoped VMEM) -------
    # Double-buffered x tile (bf16) + out tile (f32) per grid step.
    bytes_per_row = 2 * (inp_dim * 2 + out_dim * 4)
    tm_budget = max(8, (16 << 20) // max(bytes_per_row, 1))
    tm = min(block_rows, tm_budget, _round_up(n, 8))
    tm = max(8, (tm // 8) * 8)
    grid = (pl.cdiv(n, tm),)

    param_spec = pl.BlockSpec((1, out_dim), lambda i: (0, 0))
    weight_spec = pl.BlockSpec((inp_dim, out_dim), lambda i: (0, 0))

    cost = pl.CostEstimate(
        flops=2 * n * inp_dim * (2 * out_dim),
        transcendentals=n * out_dim,                       # sigmoid
        bytes_accessed=(n * inp_dim * 2                    # x, bf16
                        + n * out_dim * 4                  # out, f32
                        + 2 * inp_dim * out_dim * 2        # weights, bf16
                        + 6 * out_dim * 4),                # bias / BN vectors
    )

    return pl.pallas_call(
        glu_kernel,
        out_shape=jax.ShapeDtypeStruct((n, out_dim), jnp.float32),
        grid_spec=pltpu.PrefetchScalarGridSpec(
            num_scalar_prefetch=0,
            grid=grid,
            in_specs=[
                pl.BlockSpec((tm, inp_dim), lambda i: (i, 0)),   # x tile
                weight_spec, weight_spec,                        # w_a, w_g
                param_spec, param_spec,                          # b_a, b_g
                param_spec, param_spec,                          # sc_a, sh_a
                param_spec, param_spec,                          # sc_g, sh_g
            ],
            out_specs=pl.BlockSpec((tm, out_dim), lambda i: (i, 0)),
        ),
        compiler_params=pltpu.CompilerParams(
            dimension_semantics=("parallel",)),
        cost_estimate=cost,
    )(x_bf, w_a, w_g, b_a, b_g, sc_a, sh_a, sc_g, sh_g)


def init_params(key, inp_dim, out_dim):
    k_w, k_b, k_g, k_bt, k_m, k_v = jax.random.split(key, 6)
    two_od = 2 * out_dim
    # PyTorch nn.Linear init: U(-1/sqrt(inp_dim), 1/sqrt(inp_dim))
    bound = 1.0 / jnp.sqrt(jnp.float32(inp_dim))
    w = jax.random.uniform(k_w, (inp_dim, two_od), jnp.float32, -bound, bound)
    b = jax.random.uniform(k_b, (1, two_od), jnp.float32, -bound, bound)
    # BatchNorm affine params / running stats (deterministic, non-trivial).
    gamma = 1.0 + 0.1 * jax.random.normal(k_g, (1, two_od), jnp.float32)
    beta = 0.1 * jax.random.normal(k_bt, (1, two_od), jnp.float32)
    running_mean = 0.05 * jax.random.normal(k_m, (1, two_od), jnp.float32)
    running_var = 1.0 + 0.1 * jax.random.uniform(k_v, (1, two_od), jnp.float32)
    return w, b, gamma, beta, running_mean, running_var


if __name__ == "__main__":
    batch, inp_dim, out_dim = 256, 32, 16

    key = jax.random.PRNGKey(0)
    k_x, k_p = jax.random.split(key)
    x = jax.random.normal(k_x, (batch, inp_dim), jnp.float32)
    params = init_params(k_p, inp_dim, out_dim)

    # block_rows=128 -> grid=(2,) at this small batch, exercising the pipeline.
    out = glu_forward(x, *params, out_dim, block_rows=128)
    out = jax.block_until_ready(out)

    # Pure-JAX reference using the same bf16 rounding of the streamed operands.
    w, b, gamma, beta, mean, var = params
    x_r = x.astype(jnp.bfloat16).astype(jnp.float32)
    w_r = w.astype(jnp.bfloat16).astype(jnp.float32)
    y = x_r @ w_r + b
    y = jnp.where(y > 0, y, LEAKY_SLOPE * y)
    y = (y - mean) * jax.lax.rsqrt(var + BN_EPS) * gamma + beta
    ref = y[:, :out_dim] * jax.nn.sigmoid(y[:, out_dim:])

    assert out.shape == (batch, out_dim)
    err = float(jnp.max(jnp.abs(out - ref)))
    assert jnp.allclose(out, ref, atol=1e-4, rtol=1e-4), err

    print("KERNEL_OK")
</pallas_src>

<mosaic_0001>
module attributes {stable_mosaic.version = 11 : i64} {
  func.func @glu_kernel(%arg0: i32, %arg1: memref<128x32xbf16, #tpu.memory_space<vmem>>, %arg2: memref<32x16xbf16, #tpu.memory_space<vmem>>, %arg3: memref<32x16xbf16, #tpu.memory_space<vmem>>, %arg4: memref<1x16xf32, #tpu.memory_space<vmem>>, %arg5: memref<1x16xf32, #tpu.memory_space<vmem>>, %arg6: memref<1x16xf32, #tpu.memory_space<vmem>>, %arg7: memref<1x16xf32, #tpu.memory_space<vmem>>, %arg8: memref<1x16xf32, #tpu.memory_space<vmem>>, %arg9: memref<1x16xf32, #tpu.memory_space<vmem>>, %arg10: memref<128x16xf32, #tpu.memory_space<vmem>>) attributes {dimension_semantics = [#tpu.dimension_semantics<parallel>], iteration_bounds = array<i64: 2>, scalar_prefetch = 0 : i64, scratch_operands = 0 : i64, tpu.core_type = #tpu.core_type<tc>, window_params = [{transform_indices = @transform_0, window_bounds = array<i64: 128, 32>}, {pipeline_mode = #tpu.pipeline_mode<synchronous>, transform_indices = @transform_1, window_bounds = array<i64: 32, 16>}, {pipeline_mode = #tpu.pipeline_mode<synchronous>, transform_indices = @transform_2, window_bounds = array<i64: 32, 16>}, {pipeline_mode = #tpu.pipeline_mode<synchronous>, transform_indices = @transform_3, window_bounds = array<i64: 1, 16>}, {pipeline_mode = #tpu.pipeline_mode<synchronous>, transform_indices = @transform_4, window_bounds = array<i64: 1, 16>}, {pipeline_mode = #tpu.pipeline_mode<synchronous>, transform_indices = @transform_5, window_bounds = array<i64: 1, 16>}, {pipeline_mode = #tpu.pipeline_mode<synchronous>, transform_indices = @transform_6, window_bounds = array<i64: 1, 16>}, {pipeline_mode = #tpu.pipeline_mode<synchronous>, transform_indices = @transform_7, window_bounds = array<i64: 1, 16>}, {pipeline_mode = #tpu.pipeline_mode<synchronous>, transform_indices = @transform_8, window_bounds = array<i64: 1, 16>}, {transform_indices = @transform_9, window_bounds = array<i64: 128, 16>}]} {
    %c0 = arith.constant 0 : index
    %c0_0 = arith.constant 0 : index
    %0 = vector.load %arg1[%c0, %c0_0] : memref<128x32xbf16, #tpu.memory_space<vmem>>, vector<128x32xbf16>
    %c0_1 = arith.constant 0 : index
    %c0_2 = arith.constant 0 : index
    %1 = vector.load %arg2[%c0_1, %c0_2] : memref<32x16xbf16, #tpu.memory_space<vmem>>, vector<32x16xbf16>
    %cst = arith.constant dense<0.000000e+00> : vector<128x16xf32>
    %2 = tpu.matmul %0, %1, %cst {dimension_numbers = #tpu.dot_dimension_numbers<[1], [0], [0], [1], [0, 0, 1, 1], [], []>} : vector<128x32xbf16>, vector<32x16xbf16>, vector<128x16xf32> -> vector<128x16xf32>
    %c0_3 = arith.constant 0 : index
    %c0_4 = arith.constant 0 : index
    %3 = vector.load %arg4[%c0_3, %c0_4] : memref<1x16xf32, #tpu.memory_space<vmem>>, vector<1x16xf32>
    %4 = vector.broadcast %3 : vector<1x16xf32> to vector<128x16xf32>
    %5 = arith.addf %2, %4 : vector<128x16xf32>
    %c0_5 = arith.constant 0 : index
    %c0_6 = arith.constant 0 : index
    %6 = vector.load %arg3[%c0_5, %c0_6] : memref<32x16xbf16, #tpu.memory_space<vmem>>, vector<32x16xbf16>
    %cst_7 = arith.constant dense<0.000000e+00> : vector<128x16xf32>
    %7 = tpu.matmul %0, %6, %cst_7 {dimension_numbers = #tpu.dot_dimension_numbers<[1], [0], [0], [1], [0, 0, 1, 1], [], []>} : vector<128x32xbf16>, vector<32x16xbf16>, vector<128x16xf32> -> vector<128x16xf32>
    %c0_8 = arith.constant 0 : index
    %c0_9 = arith.constant 0 : index
    %8 = vector.load %arg5[%c0_8, %c0_9] : memref<1x16xf32, #tpu.memory_space<vmem>>, vector<1x16xf32>
    %9 = vector.broadcast %8 : vector<1x16xf32> to vector<128x16xf32>
    %10 = arith.addf %7, %9 : vector<128x16xf32>
    %cst_10 = arith.constant 0.000000e+00 : f32
    %11 = vector.broadcast %cst_10 : f32 to vector<128x16xf32>
    %12 = arith.cmpf ogt, %5, %11 : vector<128x16xf32>
    %cst_11 = arith.constant 0.00999999977 : f32
    %13 = vector.broadcast %cst_11 : f32 to vector<128x16xf32>
    %14 = arith.mulf %13, %5 : vector<128x16xf32>
    %15 = arith.select %12, %5, %14 : vector<128x16xi1>, vector<128x16xf32>
    %c0_12 = arith.constant 0 : index
    %c0_13 = arith.constant 0 : index
    %16 = vector.load %arg6[%c0_12, %c0_13] : memref<1x16xf32, #tpu.memory_space<vmem>>, vector<1x16xf32>
    %17 = vector.broadcast %16 : vector<1x16xf32> to vector<128x16xf32>
    %18 = arith.mulf %15, %17 : vector<128x16xf32>
    %c0_14 = arith.constant 0 : index
    %c0_15 = arith.constant 0 : index
    %19 = vector.load %arg7[%c0_14, %c0_15] : memref<1x16xf32, #tpu.memory_space<vmem>>, vector<1x16xf32>
    %20 = vector.broadcast %19 : vector<1x16xf32> to vector<128x16xf32>
    %21 = arith.addf %18, %20 : vector<128x16xf32>
    %cst_16 = arith.constant 0.000000e+00 : f32
    %22 = vector.broadcast %cst_16 : f32 to vector<128x16xf32>
    %23 = arith.cmpf ogt, %10, %22 : vector<128x16xf32>
    %cst_17 = arith.constant 0.00999999977 : f32
    %24 = vector.broadcast %cst_17 : f32 to vector<128x16xf32>
    %25 = arith.mulf %24, %10 : vector<128x16xf32>
    %26 = arith.select %23, %10, %25 : vector<128x16xi1>, vector<128x16xf32>
    %c0_18 = arith.constant 0 : index
    %c0_19 = arith.constant 0 : index
    %27 = vector.load %arg8[%c0_18, %c0_19] : memref<1x16xf32, #tpu.memory_space<vmem>>, vector<1x16xf32>
    %28 = vector.broadcast %27 : vector<1x16xf32> to vector<128x16xf32>
    %29 = arith.mulf %26, %28 : vector<128x16xf32>
    %c0_20 = arith.constant 0 : index
    %c0_21 = arith.constant 0 : index
    %30 = vector.load %arg9[%c0_20, %c0_21] : memref<1x16xf32, #tpu.memory_space<vmem>>, vector<1x16xf32>
    %31 = vector.broadcast %30 : vector<1x16xf32> to vector<128x16xf32>
    %32 = arith.addf %29, %31 : vector<128x16xf32>
    %33 = arith.negf %32 : vector<128x16xf32>
    %34 = math.exp %33 : vector<128x16xf32>
    %cst_22 = arith.constant 1.000000e+00 : f32
    %35 = vector.broadcast %cst_22 : f32 to vector<128x16xf32>
    %36 = arith.addf %35, %34 : vector<128x16xf32>
    %37 = arith.divf %35, %36 : vector<128x16xf32>
    %38 = arith.mulf %21, %37 : vector<128x16xf32>
    %c0_23 = arith.constant 0 : index
    %c0_24 = arith.constant 0 : index
    %39 = vector.load %arg10[%c0_23, %c0_24] : memref<128x16xf32, #tpu.memory_space<vmem>>, vector<128x16xf32>
    tpu.vector_store %arg10[%c0_23, %c0_24], %38 {strides = array<i32>} : memref<128x16xf32, #tpu.memory_space<vmem>>, vector<128x16xf32>,
    return
  }
  func.func @transform_0(%arg0: i32) -> (i32, i32) {
    %c0_i32 = arith.constant 0 : i32
    %c0_i32_0 = arith.constant 0 : i32
    return %arg0, %c0_i32 : i32, i32
  }
  func.func @transform_1(%arg0: i32) -> (i32, i32) {
    %c0_i32 = arith.constant 0 : i32
    %c0_i32_0 = arith.constant 0 : i32
    %c0_i32_1 = arith.constant 0 : i32
    return %c0_i32, %c0_i32_0 : i32, i32
  }
  func.func @transform_2(%arg0: i32) -> (i32, i32) {
    %c0_i32 = arith.constant 0 : i32
    %c0_i32_0 = arith.constant 0 : i32
    %c0_i32_1 = arith.constant 0 : i32
    return %c0_i32, %c0_i32_0 : i32, i32
  }
  func.func @transform_3(%arg0: i32) -> (i32, i32) {
    %c0_i32 = arith.constant 0 : i32
    %c0_i32_0 = arith.constant 0 : i32
    %c0_i32_1 = arith.constant 0 : i32
    return %c0_i32, %c0_i32_0 : i32, i32
  }
  func.func @transform_4(%arg0: i32) -> (i32, i32) {
    %c0_i32 = arith.constant 0 : i32
    %c0_i32_0 = arith.constant 0 : i32
    %c0_i32_1 = arith.constant 0 : i32
    return %c0_i32, %c0_i32_0 : i32, i32
  }
  func.func @transform_5(%arg0: i32) -> (i32, i32) {
    %c0_i32 = arith.constant 0 : i32
    %c0_i32_0 = arith.constant 0 : i32
    %c0_i32_1 = arith.constant 0 : i32
    return %c0_i32, %c0_i32_0 : i32, i32
  }
  func.func @transform_6(%arg0: i32) -> (i32, i32) {
    %c0_i32 = arith.constant 0 : i32
    %c0_i32_0 = arith.constant 0 : i32
    %c0_i32_1 = arith.constant 0 : i32
    return %c0_i32, %c0_i32_0 : i32, i32
  }
  func.func @transform_7(%arg0: i32) -> (i32, i32) {
    %c0_i32 = arith.constant 0 : i32
    %c0_i32_0 = arith.constant 0 : i32
    %c0_i32_1 = arith.constant 0 : i32
    return %c0_i32, %c0_i32_0 : i32, i32
  }
  func.func @transform_8(%arg0: i32) -> (i32, i32) {
    %c0_i32 = arith.constant 0 : i32
    %c0_i32_0 = arith.constant 0 : i32
    %c0_i32_1 = arith.constant 0 : i32
    return %c0_i32, %c0_i32_0 : i32, i32
  }
  func.func @transform_9(%arg0: i32) -> (i32, i32) {
    %c0_i32 = arith.constant 0 : i32
    %c0_i32_0 = arith.constant 0 : i32
    return %arg0, %c0_i32 : i32, i32
  }
}

</mosaic_0001>

<llo_original>
// kernel: tpu_custom_call.1
$region0: #{tpu_custom_call.1}
  #allocation0 [shape = 'u32[]', space=smem, size = 0x4, offset = 0x4, fixed_abs, tag = 'smem constant byte address 0x4 - core index']
  #allocation1 [shape = 'u32[144,128]{1,0:T(1,128)}', space=vmem, size = 0x12000, scoped, tag = 'internal scratch']
  %s0 = inlined_call_operand.vmem [shape: bf16[256,32], index: 0, kind: input, shape index: {}]
  %s1 = inlined_call_operand.vmem [shape: bf16[32,16], index: 1, kind: input, shape index: {}]
  %s2 = inlined_call_operand.vmem [shape: bf16[32,16], index: 2, kind: input, shape index: {}]
  %s3 = inlined_call_operand.vmem [shape: f32[1,16], index: 3, kind: input, shape index: {}]
  %s4 = inlined_call_operand.vmem [shape: f32[1,16], index: 4, kind: input, shape index: {}]
  %s5 = inlined_call_operand.vmem [shape: f32[1,16], index: 5, kind: input, shape index: {}]
  %s6 = inlined_call_operand.vmem [shape: f32[1,16], index: 6, kind: input, shape index: {}]
  %s7 = inlined_call_operand.vmem [shape: f32[1,16], index: 7, kind: input, shape index: {}]
  %s8 = inlined_call_operand.vmem [shape: f32[1,16], index: 8, kind: input, shape index: {}]
  %s9 = inlined_call_operand.vmem [shape: f32[256,16], index: 9, kind: output, shape index: {}]
  %s10 = sld [smem:[#allocation0]]
  $region69: #{tpu_custom_call.1} parent=0
    _
  %s12 = ssub.s32 1, %s10
  %s13 = scalar_select 0, %s12, %s10
  loop: start=0, step=1, limit=4
  $region2: #{tpu_custom_call.1} parent=0 // loop_pre_header
    _
  $region3: #{tpu_custom_call.1} parent=0 // loop_header
    %s15 = sphi 0, %s19
    %p16 = scmp.ge.s32.totalorder %s15, 4
    %s25 = sphi 0, %s27
    %s28 = sphi 0, %s25
    %s29 = sphi 0, %s28
    %s45 = sphi 0, %s29
    %s49 = sphi 0, %s49
    %s51 = sphi 0, %s49
    %s52 = sphi 0, %s51
    %s66 = sphi 0, %s52
    %s70 = sphi 0, %s70
    %s72 = sphi 0, %s70
    %s73 = sphi 0, %s72
    %s87 = sphi 0, %s73
    %s91 = sphi 0, %s91
    %s93 = sphi 0, %s91
    %s94 = sphi 0, %s93
    %s108 = sphi 0, %s94
    %s112 = sphi 0, %s112
    %s114 = sphi 0, %s112
    %s115 = sphi 0, %s114
    %s129 = sphi 0, %s115
    %s133 = sphi 0, %s133
    %s135 = sphi 0, %s133
    %s136 = sphi 0, %s135
    %s150 = sphi 0, %s136
    %s154 = sphi 0, %s154
    %s156 = sphi 0, %s154
    %s157 = sphi 0, %s156
    %s171 = sphi 0, %s157
    %s175 = sphi 0, %s175
    %s177 = sphi 0, %s175
    %s178 = sphi 0, %s177
    %s192 = sphi 0, %s178
    %s196 = sphi 0, %s196
    %s198 = sphi 0, %s196
    %s199 = sphi 0, %s198
    %s213 = sphi 0, %s199
    %s219 = sphi 0, %s221
    %s222 = sphi 0, %s219
    %s223 = sphi 0, %s222
    %s239 = sphi 0, %s223
  $region4: #{tpu_custom_call.1} parent=0 // loop_header_branch
    %18 = sbr.rel (%p16) target = $region8
  $region5: #{tpu_custom_call.1} parent=0 // loop_body
    %s20 = ssub.s32 %s15, 1
    %s21 = ssub.s32 %s15, 2
    %s22 = sadd.s32 %s15, 1
    %s23 = ssub.s32 %s15, %s22
    %p24 = scmp.eq.s32.totalorder %s23, 0
    %s26 = sadd.s32 %s25, 1
    %s27 = scalar_select %p24, %s25, %s26
    %p30 = pneg %p24
    %p31 = scmp.eq.s32.totalorder %s15, 1
    %p32 = por %p30, %p31
    %p33 = scmp.ne.s32.totalorder %s25, %s28
    %p34 = scmp.eq.s32.totalorder %s15, 0
    %p35 = por %p33, %p34
    %p36 = scmp.ne.s32.totalorder %s25, %s28
    %p37 = scmp.eq.s32.totalorder %s20, 1
    %p38 = por %p36, %p37
    %p39 = scmp.ne.s32.totalorder %s28, %s29
    %p40 = scmp.eq.s32.totalorder %s20, 0
    %p41 = por %p39, %p40
    %p42 = scmp.ne.s32.totalorder %s28, %s29
    %p43 = scmp.eq.s32.totalorder %s21, 1
    %p44 = por %p42, %p43
    %p46 = scmp.ne.s32.totalorder %s29, %s45
    %p47 = scmp.eq.s32.totalorder %s21, 0
    %p48 = por %p46, %p47
    %s50 = sadd.s32 %s49, 1
    %p53 = scmp.eq.s32.totalorder %s15, 1
    %p54 = scmp.ne.s32.totalorder %s49, %s51
    %p55 = scmp.eq.s32.totalorder %s15, 0
    %p56 = por %p54, %p55
    %p57 = scmp.ne.s32.totalorder %s49, %s51
    %p58 = scmp.eq.s32.totalorder %s20, 1
    %p59 = por %p57, %p58
    %p60 = scmp.ne.s32.totalorder %s51, %s52
    %p61 = scmp.eq.s32.totalorder %s20, 0
    %p62 = por %p60, %p61
    %p63 = scmp.ne.s32.totalorder %s51, %s52
    %p64 = scmp.eq.s32.totalorder %s21, 1
    %p65 = por %p63, %p64
    %p67 = scmp.ne.s32.totalorder %s52, %s66
    %p68 = scmp.eq.s32.totalorder %s21, 0
    %p69 = por %p67, %p68
    %s71 = sadd.s32 %s70, 1
    %p74 = scmp.eq.s32.totalorder %s15, 1
    %p75 = scmp.ne.s32.totalorder %s70, %s72
    %p76 = scmp.eq.s32.totalorder %s15, 0
    %p77 = por %p75, %p76
    %p78 = scmp.ne.s32.totalorder %s70, %s72
    %p79 = scmp.eq.s32.totalorder %s20, 1
    %p80 = por %p78, %p79
    %p81 = scmp.ne.s32.totalorder %s72, %s73
    %p82 = scmp.eq.s32.totalorder %s20, 0
    %p83 = por %p81, %p82
    %p84 = scmp.ne.s32.totalorder %s72, %s73
    %p85 = scmp.eq.s32.totalorder %s21, 1
    %p86 = por %p84, %p85
    %p88 = scmp.ne.s32.totalorder %s73, %s87
    %p89 = scmp.eq.s32.totalorder %s21, 0
    %p90 = por %p88, %p89
    %s92 = sadd.s32 %s91, 1
    %p95 = scmp.eq.s32.totalorder %s15, 1
    %p96 = scmp.ne.s32.totalorder %s91, %s93
    %p97 = scmp.eq.s32.totalorder %s15, 0
    %p98 = por %p96, %p97
    %p99 = scmp.ne.s32.totalorder %s91, %s93
    %p100 = scmp.eq.s32.totalorder %s20, 1
    %p101 = por %p99, %p100
    %p102 = scmp.ne.s32.totalorder %s93, %s94
    %p103 = scmp.eq.s32.totalorder %s20, 0
    %p104 = por %p102, %p103
    %p105 = scmp.ne.s32.totalorder %s93, %s94
    %p106 = scmp.eq.s32.totalorder %s21, 1
    %p107 = por %p105, %p106
    %p109 = scmp.ne.s32.totalorder %s94, %s108
    %p110 = scmp.eq.s32.totalorder %s21, 0
    %p111 = por %p109, %p110
    %s113 = sadd.s32 %s112, 1
    %p116 = scmp.eq.s32.totalorder %s15, 1
    %p117 = scmp.ne.s32.totalorder %s112, %s114
    %p118 = scmp.eq.s32.totalorder %s15, 0
    %p119 = por %p117, %p118
    %p120 = scmp.ne.s32.totalorder %s112, %s114
    %p121 = scmp.eq.s32.totalorder %s20, 1
    %p122 = por %p120, %p121
    %p123 = scmp.ne.s32.totalorder %s114, %s115
    %p124 = scmp.eq.s32.totalorder %s20, 0
    %p125 = por %p123, %p124
    %p126 = scmp.ne.s32.totalorder %s114, %s115
    %p127 = scmp.eq.s32.totalorder %s21, 1
    %p128 = por %p126, %p127
    %p130 = scmp.ne.s32.totalorder %s115, %s129
    %p131 = scmp.eq.s32.totalorder %s21, 0
    %p132 = por %p130, %p131
    %s134 = sadd.s32 %s133, 1
    %p137 = scmp.eq.s32.totalorder %s15, 1
    %p138 = scmp.ne.s32.totalorder %s133, %s135
    %p139 = scmp.eq.s32.totalorder %s15, 0
    %p140 = por %p138, %p139
    %p141 = scmp.ne.s32.totalorder %s133, %s135
    %p142 = scmp.eq.s32.totalorder %s20, 1
    %p143 = por %p141, %p142
    %p144 = scmp.ne.s32.totalorder %s135, %s136
    %p145 = scmp.eq.s32.totalorder %s20, 0
    %p146 = por %p144, %p145
    %p147 = scmp.ne.s32.totalorder %s135, %s136
    %p148 = scmp.eq.s32.totalorder %s21, 1
    %p149 = por %p147, %p148
    %p151 = scmp.ne.s32.totalorder %s136, %s150
    %p152 = scmp.eq.s32.totalorder %s21, 0
    %p153 = por %p151, %p152
    %s155 = sadd.s32 %s154, 1
    %p158 = scmp.eq.s32.totalorder %s15, 1
    %p159 = scmp.ne.s32.totalorder %s154, %s156
    %p160 = scmp.eq.s32.totalorder %s15, 0
    %p161 = por %p159, %p160
    %p162 = scmp.ne.s32.totalorder %s154, %s156
    %p163 = scmp.eq.s32.totalorder %s20, 1
    %p164 = por %p162, %p163
    %p165 = scmp.ne.s32.totalorder %s156, %s157
    %p166 = scmp.eq.s32.totalorder %s20, 0
    %p167 = por %p165, %p166
    %p168 = scmp.ne.s32.totalorder %s156, %s157
    %p169 = scmp.eq.s32.totalorder %s21, 1
    %p170 = por %p168, %p169
    %p172 = scmp.ne.s32.totalorder %s157, %s171
    %p173 = scmp.eq.s32.totalorder %s21, 0
    %p174 = por %p172, %p173
    %s176 = sadd.s32 %s175, 1
    %p179 = scmp.eq.s32.totalorder %s15, 1
    %p180 = scmp.ne.s32.totalorder %s175, %s177
    %p181 = scmp.eq.s32.totalorder %s15, 0
    %p182 = por %p180, %p181
    %p183 = scmp.ne.s32.totalorder %s175, %s177
    %p184 = scmp.eq.s32.totalorder %s20, 1
    %p185 = por %p183, %p184
    %p186 = scmp.ne.s32.totalorder %s177, %s178
    %p187 = scmp.eq.s32.totalorder %s20, 0
    %p188 = por %p186, %p187
    %p189 = scmp.ne.s32.totalorder %s177, %s178
    %p190 = scmp.eq.s32.totalorder %s21, 1
    %p191 = por %p189, %p190
    %p193 = scmp.ne.s32.totalorder %s178, %s192
    %p194 = scmp.eq.s32.totalorder %s21, 0
    %p195 = por %p193, %p194
    %s197 = sadd.s32 %s196, 1
    %p200 = scmp.eq.s32.totalorder %s15, 1
    %p201 = scmp.ne.s32.totalorder %s196, %s198
    %p202 = scmp.eq.s32.totalorder %s15, 0
    %p203 = por %p201, %p202
    %p204 = scmp.ne.s32.totalorder %s196, %s198
    %p205 = scmp.eq.s32.totalorder %s20, 1
    %p206 = por %p204, %p205
    %p207 = scmp.ne.s32.totalorder %s198, %s199
    %p208 = scmp.eq.s32.totalorder %s20, 0
    %p209 = por %p207, %p208
    %p210 = scmp.ne.s32.totalorder %s198, %s199
    %p211 = scmp.eq.s32.totalorder %s21, 1
    %p212 = por %p210, %p211
    %p214 = scmp.ne.s32.totalorder %s199, %s213
    %p215 = scmp.eq.s32.totalorder %s21, 0
    %p216 = por %p214, %p215
    %s217 = ssub.s32 %s15, %s22
    %p218 = scmp.eq.s32.totalorder %s217, 0
    %s220 = sadd.s32 %s219, 1
    %s221 = scalar_select %p218, %s219, %s220
    %p224 = pneg %p218
    %p225 = scmp.eq.s32.totalorder %s15, 1
    %p226 = por %p224, %p225
    %p227 = scmp.ne.s32.totalorder %s219, %s222
    %p228 = scmp.eq.s32.totalorder %s15, 0
    %p229 = por %p227, %p228
    %p230 = scmp.ne.s32.totalorder %s219, %s222
    %p231 = scmp.eq.s32.totalorder %s20, 1
    %p232 = por %p230, %p231
    %p233 = scmp.ne.s32.totalorder %s222, %s223
    %p234 = scmp.eq.s32.totalorder %s20, 0
    %p235 = por %p233, %p234
    %p236 = scmp.ne.s32.totalorder %s222, %s223
    %p237 = scmp.eq.s32.totalorder %s21, 1
    %p238 = por %p236, %p237
    %p240 = scmp.ne.s32.totalorder %s223, %s239
    %p241 = scmp.eq.s32.totalorder %s21, 0
    %p242 = por %p240, %p241
    %p243 = scmp.le.s32.totalorder 1, %s15
    %p244 = scmp.lt.s32.totalorder %s15, 3
    %p245 = pnand %p243, %p244
    %p246 = pneg %p245
    // Predicated region
    $region9: #{tpu_custom_call.1} parent=5 // pred_check
      _
    $region10: #{tpu_custom_call.1} parent=5 // pred_check_branch
      %248 = sbr.rel (%p245) target = $region12
    $region11: #{tpu_custom_call.1} parent=5 // pred_region
      %s249 = ssub.s32 %s15, 1
      // Predicated region
      $region13: #{tpu_custom_call.1} parent=11 // pred_check
        %p250 = pneg %p62
      $region14: #{tpu_custom_call.1} parent=11 // pred_check_branch
        %252 = sbr.rel (%p250) target = $region16
      $region15: #{tpu_custom_call.1} parent=11 // pred_region
        _
      $region16: #{tpu_custom_call.1} parent=11 // pred_fallthru
        _
      // Predicated region
      $region17: #{tpu_custom_call.1} parent=11 // pred_check
        %p253 = pneg %p83
      $region18: #{tpu_custom_call.1} parent=11 // pred_check_branch
        %255 = sbr.rel (%p253) target = $region20
      $region19: #{tpu_custom_call.1} parent=11 // pred_region
        _
      $region20: #{tpu_custom_call.1} parent=11 // pred_fallthru
        _
      // Predicated region
      $region21: #{tpu_custom_call.1} parent=11 // pred_check
        %p256 = pneg %p104
      $region22: #{tpu_custom_call.1} parent=11 // pred_check_branch
        %258 = sbr.rel (%p256) target = $region24
      $region23: #{tpu_custom_call.1} parent=11 // pred_region
        _
      $region24: #{tpu_custom_call.1} parent=11 // pred_fallthru
        _
      // Predicated region
      $region25: #{tpu_custom_call.1} parent=11 // pred_check
        %p259 = pneg %p125
      $region26: #{tpu_custom_call.1} parent=11 // pred_check_branch
        %261 = sbr.rel (%p259) target = $region28
      $region27: #{tpu_custom_call.1} parent=11 // pred_region
        _
      $region28: #{tpu_custom_call.1} parent=11 // pred_fallthru
        _
      // Predicated region
      $region29: #{tpu_custom_call.1} parent=11 // pred_check
        %p262 = pneg %p146
      $region30: #{tpu_custom_call.1} parent=11 // pred_check_branch
        %264 = sbr.rel (%p262) target = $region32
      $region31: #{tpu_custom_call.1} parent=11 // pred_region
        _
      $region32: #{tpu_custom_call.1} parent=11 // pred_fallthru
        _
      // Predicated region
      $region33: #{tpu_custom_call.1} parent=11 // pred_check
        %p265 = pneg %p167
      $region34: #{tpu_custom_call.1} parent=11 // pred_check_branch
        %267 = sbr.rel (%p265) target = $region36
      $region35: #{tpu_custom_call.1} parent=11 // pred_region
        _
      $region36: #{tpu_custom_call.1} parent=11 // pred_fallthru
        _
      // Predicated region
      $region37: #{tpu_custom_call.1} parent=11 // pred_check
        %p268 = pneg %p188
      $region38: #{tpu_custom_call.1} parent=11 // pred_check_branch
        %270 = sbr.rel (%p268) target = $region40
      $region39: #{tpu_custom_call.1} parent=11 // pred_region
        _
      $region40: #{tpu_custom_call.1} parent=11 // pred_fallthru
        _
      // Predicated region
      $region41: #{tpu_custom_call.1} parent=11 // pred_check
        %p271 = pneg %p209
      $region42: #{tpu_custom_call.1} parent=11 // pred_check_branch
        %273 = sbr.rel (%p271) target = $region44
      $region43: #{tpu_custom_call.1} parent=11 // pred_region
        _
      $region44: #{tpu_custom_call.1} parent=11 // pred_fallthru
        _
    $region12: #{tpu_custom_call.1} parent=5 // pred_fallthru
      _
    %p274 = scmp.lt.s32.totalorder %s15, 2
    // Predicated region
    $region45: #{tpu_custom_call.1} parent=5 // pred_check
      %p275 = pneg %p274
    $region46: #{tpu_custom_call.1} parent=5 // pred_check_branch
      %277 = sbr.rel (%p275) target = $region48
    $region47: #{tpu_custom_call.1} parent=5 // pred_region
      // Predicated region
      $region49: #{tpu_custom_call.1} parent=47 // pred_check
        %p278 = pneg %p35
      $region50: #{tpu_custom_call.1} parent=47 // pred_check_branch
        %280 = sbr.rel (%p278) target = $region52
      $region51: #{tpu_custom_call.1} parent=47 // pred_region
        %s281 = smul.u32 16, %s15
        %p282 = scmp.lt.s32.totalorder %s281, 31
        %s283 = scalar_select %p282, %s281, 31
        %s284 = smul.addr %s283, 4
        %s285 = scalar_lea.vmem %s0, %s284
        %s286 = smul.u32 16, %s15
      $region52: #{tpu_custom_call.1} parent=47 // pred_fallthru
        _
    $region48: #{tpu_custom_call.1} parent=5 // pred_fallthru
      _
    %p287 = scmp.le.s32.totalorder 1, %s15
    %p288 = scmp.lt.s32.totalorder %s15, 3
    %p289 = pnand %p287, %p288
    %p290 = pneg %p289
    // Predicated region
    $region53: #{tpu_custom_call.1} parent=5 // pred_check
      _
    $region54: #{tpu_custom_call.1} parent=5 // pred_check_branch
      %292 = sbr.rel (%p289) target = $region56
    $region55: #{tpu_custom_call.1} parent=5 // pred_region
      %s293 = ssub.s32 %s15, 1
      %s294 = smul.u32 16, %s20
      %p295 = scmp.lt.s32.totalorder %s294, 31
      %s296 = scalar_select %p295, %s294, 31
      %s297 = smul.addr %s296, 4
      %s298 = scalar_lea.vmem %s0, %s297
      %p299 = pneg %p41
      %p300 = pneg %p38
      %p301 = pneg %p62
      %p302 = pneg %p59
      %p303 = pneg %p83
      %p304 = pneg %p80
      %p305 = pneg %p104
      %p306 = pneg %p101
      %p307 = pneg %p125
      %p308 = pneg %p122
      %p309 = pneg %p146
      %p310 = pneg %p143
      %p311 = pneg %p167
      %p312 = pneg %p164
      %p313 = pneg %p188
      %p314 = pneg %p185
      %p315 = pneg %p209
      %p316 = pneg %p206
      %p317 = pneg %p235
      %p318 = pneg %p232
      %s319 = smul.u32 16, %s20
      %p320 = scmp.lt.s32.totalorder %s319, 31
      %s321 = scalar_select %p320, %s319, 31
      %s322 = smul.addr %s321, 8
      %s323 = scalar_lea.vmem %s9, %s322
      %s324 = smul.u32 16, %s20
      %p325 = scmp.lt.s32.totalorder %s324, 31
      %s326 = scalar_select %p325, %s324, 31
      %s327 = smul.addr %s326, 4
      %s328 = scalar_lea.vmem %s0, %s327
      %s329 = smul.u32 16, %s20
      %s330 = smul.u32 16, %s20
      %p331 = scmp.lt.s32.totalorder %s330, 31
      %s332 = scalar_select %p331, %s330, 31
      %s333 = smul.addr %s332, 8
      %s334 = scalar_lea.vmem %s9, %s333
      %s335 = smul.u32 16, %s20
      %v337 = vld [vmem:[%s328] sm:$0xf]
      %v338 = vld [vmem:[%s328 + $0x4] sm:$0xf]
      %v339 = vld [vmem:[%s328 + $0x8] sm:$0xf]
      %v340 = vld [vmem:[%s328 + $0xc] sm:$0xf]
      %v341 = vld [vmem:[%s328 + $0x10] sm:$0xf]
      %v342 = vld [vmem:[%s328 + $0x14] sm:$0xf]
      %v343 = vld [vmem:[%s328 + $0x18] sm:$0xf]
      %v344 = vld [vmem:[%s328 + $0x1c] sm:$0xf]
      %v345 = vld [vmem:[%s328 + $0x20] sm:$0xf]
      %v346 = vld [vmem:[%s328 + $0x24] sm:$0xf]
      %v347 = vld [vmem:[%s328 + $0x28] sm:$0xf]
      %v348 = vld [vmem:[%s328 + $0x2c] sm:$0xf]
      %v349 = vld [vmem:[%s328 + $0x30] sm:$0xf]
      %v350 = vld [vmem:[%s328 + $0x34] sm:$0xf]
      %v351 = vld [vmem:[%s328 + $0x38] sm:$0xf]
      %v352 = vld [vmem:[%s328 + $0x3c] sm:$0xf]
      %v353 = vld [vmem:[%s1] sm:$0xf]
      %v354 = vld [vmem:[%s1 + $0x4] sm:$0xf]
      %v355 = vld [vmem:[%s1 + $0x8] sm:$0xf]
      %v356 = vld [vmem:[%s1 + $0xc] sm:$0xf]
      %v357 = vld [vmem:[%s3] sm:$0x1]
      %v359 = vlaneseq
      %v360 = vshrl.u32 %v359, 7
      %v361 = vsub.s32 0, %v360
      %v362 = vrot.slane %v357, %v361
      %v380 = vunpack.c.l.b16 %v337
      %v381 = vunpack.c.l.b16 %v338
      %v382 = vunpack.c.l.b16 %v339
      %v383 = vunpack.c.l.b16 %v340
      %v384 = vunpack.c.l.b16 %v341
      %v385 = vunpack.c.l.b16 %v342
      %v386 = vunpack.c.l.b16 %v343
      %v387 = vunpack.c.l.b16 %v344
      %v388 = vunpack.c.l.b16 %v345
      %v389 = vunpack.c.l.b16 %v346
      %v390 = vunpack.c.l.b16 %v347
      %v391 = vunpack.c.l.b16 %v348
      %v392 = vunpack.c.l.b16 %v349
      %v393 = vunpack.c.l.b16 %v350
      %v394 = vunpack.c.l.b16 %v351
      %v395 = vunpack.c.l.b16 %v352
      %v396 = vpack.c.b16 %v381, %v380
      %v397 = vpack.c.b16 %v383, %v382
      %v398 = vpack.c.b16 %v385, %v384
      %v399 = vpack.c.b16 %v387, %v386
      %v400 = vpack.c.b16 %v389, %v388
      %v401 = vpack.c.b16 %v391, %v390
      %v402 = vpack.c.b16 %v393, %v392
      %v403 = vpack.c.b16 %v395, %v394
      %v408 = vunpack.c.l.b16 %v353
      %v409 = vunpack.c.l.b16 %v354
      %v410 = vunpack.c.l.b16 %v355
      %v411 = vunpack.c.l.b16 %v356
      %v412 = vpack.c.b16 %v409, %v408
      %v413 = vpack.c.b16 %v411, %v410
      %vm416 = vcmask 261120
      %v418 = vsel %vm416, %v396, 0
      %v421 = vsel %vm416, %v397, 0
      %v424 = vsel %vm416, %v398, 0
      %v427 = vsel %vm416, %v399, 0
      %v430 = vsel %vm416, %v400, 0
      %v433 = vsel %vm416, %v401, 0
      %v436 = vsel %vm416, %v402, 0
      %v439 = vsel %vm416, %v403, 0
      %441 = vmatprep.subr.bf16.mxu0 0
      %442 = vmatpush1.bf16.msra.mxu0 %v412
      %443 = vmatprep.subr.bf16.mxu0 0
      %444 = vmatpush1.bf16.msra.mxu0 %v413
      %445 = vmatprep.subr.bf16.mxu0 0
      %446 = vmatpush1.bf16.msra.mxu0 0
      %447 = vmatprep.subr.bf16.mxu0 0
      %448 = vmatpush1.bf16.msra.mxu0 0
      %449 = vmatprep.subr.bf16.mxu0 0
      %450 = vmatpush1.bf16.msra.mxu0 0
      %451 = vmatprep.subr.bf16.mxu0 0
      %452 = vmatpush1.bf16.msra.mxu0 0
      %453 = vmatprep.subr.bf16.mxu0 0
      %454 = vmatpush1.bf16.msra.mxu0 0
      %455 = vmatprep.subr.bf16.mxu0 0
      %456 = vmatpush1.bf16.msra.mxu0 0
      %457 = vmatprep.subr.bf16.mxu0 0
      %458 = vmatpush1.bf16.msra.mxu0 0
      %459 = vmatprep.subr.bf16.mxu0 0
      %460 = vmatpush1.bf16.msra.mxu0 0
      %461 = vmatprep.subr.bf16.mxu0 0
      %462 = vmatpush1.bf16.msra.mxu0 0
      %463 = vmatprep.subr.bf16.mxu0 0
      %464 = vmatpush1.bf16.msra.mxu0 0
      %465 = vmatprep.subr.bf16.mxu0 0
      %466 = vmatpush1.bf16.msra.mxu0 0
      %467 = vmatprep.subr.bf16.mxu0 0
      %468 = vmatpush1.bf16.msra.mxu0 0
      %469 = vmatprep.subr.bf16.mxu0 0
      %470 = vmatpush1.bf16.msra.mxu0 0
      %471 = vmatprep.subr.bf16.mxu0 0
      %472 = vmatpush1.bf16.msra.mxu0 0
      %473 = vmatprep.mubr.bf16.mxu0 0
      %474 = vmatmul.mubr.bf16.gmra.mrb[0].mxu0 %v418
      %v475 = vpop.f32.mrb[0].mxu0
      %v476 = vadd.f32 %v362, %v475
      %v477 = vpop.f32.mrb[0].mxu0
      %v478 = vpop.f32.mrb[0].mxu0
      %v479 = vadd.f32 %v362, %v478
      %v480 = vpop.f32.mrb[0].mxu0
      %481 = vmatprep.mubr.bf16.mxu0 0
      %482 = vmatmul.mubr.bf16.gmra.mrb[0].mxu0 %v421
      %v483 = vpop.f32.mrb[0].mxu0
      %v484 = vadd.f32 %v362, %v483
      %v485 = vpop.f32.mrb[0].mxu0
      %v486 = vpop.f32.mrb[0].mxu0
      %v487 = vadd.f32 %v362, %v486
      %v488 = vpop.f32.mrb[0].mxu0
      %489 = vmatprep.mubr.bf16.mxu0 0
      %490 = vmatmul.mubr.bf16.gmra.mrb[0].mxu0 %v424
      %v491 = vpop.f32.mrb[0].mxu0
      %v492 = vadd.f32 %v362, %v491
      %v493 = vpop.f32.mrb[0].mxu0
      %v494 = vpop.f32.mrb[0].mxu0
      %v495 = vadd.f32 %v362, %v494
      %v496 = vpop.f32.mrb[0].mxu0
      %497 = vmatprep.mubr.bf16.mxu0 0
      %498 = vmatmul.mubr.bf16.gmra.mrb[0].mxu0 %v427
      %v499 = vpop.f32.mrb[0].mxu0
      %v500 = vadd.f32 %v362, %v499
      %v501 = vpop.f32.mrb[0].mxu0
      %v502 = vpop.f32.mrb[0].mxu0
      %v503 = vadd.f32 %v362, %v502
      %v504 = vpop.f32.mrb[0].mxu0
      %505 = vmatprep.mubr.bf16.mxu0 0
      %506 = vmatmul.mubr.bf16.gmra.mrb[0].mxu0 %v430
      %v507 = vpop.f32.mrb[0].mxu0
      %v508 = vadd.f32 %v362, %v507
      %v509 = vpop.f32.mrb[0].mxu0
      %v510 = vpop.f32.mrb[0].mxu0
      %v511 = vadd.f32 %v362, %v510
      %v512 = vpop.f32.mrb[0].mxu0
      %513 = vmatprep.mubr.bf16.mxu0 0
      %514 = vmatmul.mubr.bf16.gmra.mrb[0].mxu0 %v433
      %v515 = vpop.f32.mrb[0].mxu0
      %v516 = vadd.f32 %v362, %v515
      %v517 = vpop.f32.mrb[0].mxu0
      %v518 = vpop.f32.mrb[0].mxu0
      %v519 = vadd.f32 %v362, %v518
      %v520 = vpop.f32.mrb[0].mxu0
      %521 = vmatprep.mubr.bf16.mxu0 0
      %522 = vmatmul.mubr.bf16.gmra.mrb[0].mxu0 %v436
      %v523 = vpop.f32.mrb[0].mxu0
      %v524 = vadd.f32 %v362, %v523
      %v525 = vpop.f32.mrb[0].mxu0
      %v526 = vpop.f32.mrb[0].mxu0
      %v527 = vadd.f32 %v362, %v526
      %v528 = vpop.f32.mrb[0].mxu0
      %529 = vmatprep.mubr.bf16.mxu0 0
      %530 = vmatmul.mubr.bf16.gmra.mrb[0].mxu0 %v439
      %v531 = vpop.f32.mrb[0].mxu0
      %v532 = vadd.f32 %v362, %v531
      %v533 = vpop.f32.mrb[0].mxu0
      %v534 = vpop.f32.mrb[0].mxu0
      %v535 = vadd.f32 %v362, %v534
      %v536 = vpop.f32.mrb[0].mxu0
      %537 = vdwg.mxu0
      %v538 = vld [vmem:[%s2] sm:$0xf]
      %v539 = vld [vmem:[%s2 + $0x4] sm:$0xf]
      %v540 = vld [vmem:[%s2 + $0x8] sm:$0xf]
      %v541 = vld [vmem:[%s2 + $0xc] sm:$0xf]
      %v542 = vld [vmem:[%s4] sm:$0x1]
      %v544 = vlaneseq
      %v545 = vshrl.u32 %v544, 7
      %v546 = vsub.s32 0, %v545
      %v547 = vrot.slane %v542, %v546
      %v553 = vunpack.c.l.b16 %v538
      %v554 = vunpack.c.l.b16 %v539
      %v555 = vunpack.c.l.b16 %v540
      %v556 = vunpack.c.l.b16 %v541
      %v557 = vpack.c.b16 %v554, %v553
      %v558 = vpack.c.b16 %v556, %v555
      %561 = vmatprep.subr.bf16.mxu0 0
      %562 = vmatpush1.bf16.msra.mxu0 %v557
      %563 = vmatprep.subr.bf16.mxu0 0
      %564 = vmatpush1.bf16.msra.mxu0 %v558
      %565 = vmatprep.subr.bf16.mxu0 0
      %566 = vmatpush1.bf16.msra.mxu0 0
      %567 = vmatprep.subr.bf16.mxu0 0
      %568 = vmatpush1.bf16.msra.mxu0 0
      %569 = vmatprep.subr.bf16.mxu0 0
      %570 = vmatpush1.bf16.msra.mxu0 0
      %571 = vmatprep.subr.bf16.mxu0 0
      %572 = vmatpush1.bf16.msra.mxu0 0
      %573 = vmatprep.subr.bf16.mxu0 0
      %574 = vmatpush1.bf16.msra.mxu0 0
      %575 = vmatprep.subr.bf16.mxu0 0
      %576 = vmatpush1.bf16.msra.mxu0 0
      %577 = vmatprep.subr.bf16.mxu0 0
      %578 = vmatpush1.bf16.msra.mxu0 0
      %579 = vmatprep.subr.bf16.mxu0 0
      %580 = vmatpush1.bf16.msra.mxu0 0
      %581 = vmatprep.subr.bf16.mxu0 0
      %582 = vmatpush1.bf16.msra.mxu0 0
      %583 = vmatprep.subr.bf16.mxu0 0
      %584 = vmatpush1.bf16.msra.mxu0 0
      %585 = vmatprep.subr.bf16.mxu0 0
      %586 = vmatpush1.bf16.msra.mxu0 0
      %587 = vmatprep.subr.bf16.mxu0 0
      %588 = vmatpush1.bf16.msra.mxu0 0
      %589 = vmatprep.subr.bf16.mxu0 0
      %590 = vmatpush1.bf16.msra.mxu0 0
      %591 = vmatprep.subr.bf16.mxu0 0
      %592 = vmatpush1.bf16.msra.mxu0 0
      %593 = vmatprep.mubr.bf16.mxu0 0
      %594 = vmatmul.mubr.bf16.gmra.mrb[0].mxu0 %v418
      %v595 = vpop.f32.mrb[0].mxu0
      %v596 = vadd.f32 %v547, %v595
      %v597 = vpop.f32.mrb[0].mxu0
      %v598 = vpop.f32.mrb[0].mxu0
      %v599 = vadd.f32 %v547, %v598
      %v600 = vpop.f32.mrb[0].mxu0
      %601 = vmatprep.mubr.bf16.mxu0 0
      %602 = vmatmul.mubr.bf16.gmra.mrb[0].mxu0 %v421
      %v603 = vpop.f32.mrb[0].mxu0
      %v604 = vadd.f32 %v547, %v603
      %v605 = vpop.f32.mrb[0].mxu0
      %v606 = vpop.f32.mrb[0].mxu0
      %v607 = vadd.f32 %v547, %v606
      %v608 = vpop.f32.mrb[0].mxu0
      %609 = vmatprep.mubr.bf16.mxu0 0
      %610 = vmatmul.mubr.bf16.gmra.mrb[0].mxu0 %v424
      %v611 = vpop.f32.mrb[0].mxu0
      %v612 = vadd.f32 %v547, %v611
      %v613 = vpop.f32.mrb[0].mxu0
      %v614 = vpop.f32.mrb[0].mxu0
      %v615 = vadd.f32 %v547, %v614
      %v616 = vpop.f32.mrb[0].mxu0
      %617 = vmatprep.mubr.bf16.mxu0 0
      %618 = vmatmul.mubr.bf16.gmra.mrb[0].mxu0 %v427
      %v619 = vpop.f32.mrb[0].mxu0
      %v620 = vadd.f32 %v547, %v619
      %v621 = vpop.f32.mrb[0].mxu0
      %v622 = vpop.f32.mrb[0].mxu0
      %v623 = vadd.f32 %v547, %v622
      %v624 = vpop.f32.mrb[0].mxu0
      %625 = vmatprep.mubr.bf16.mxu0 0
      %626 = vmatmul.mubr.bf16.gmra.mrb[0].mxu0 %v430
      %v627 = vpop.f32.mrb[0].mxu0
      %v628 = vadd.f32 %v547, %v627
      %v629 = vpop.f32.mrb[0].mxu0
      %v630 = vpop.f32.mrb[0].mxu0
      %v631 = vadd.f32 %v547, %v630
      %v632 = vpop.f32.mrb[0].mxu0
      %633 = vmatprep.mubr.bf16.mxu0 0
      %634 = vmatmul.mubr.bf16.gmra.mrb[0].mxu0 %v433
      %v635 = vpop.f32.mrb[0].mxu0
      %v636 = vadd.f32 %v547, %v635
      %v637 = vpop.f32.mrb[0].mxu0
      %v638 = vpop.f32.mrb[0].mxu0
      %v639 = vadd.f32 %v547, %v638
      %v640 = vpop.f32.mrb[0].mxu0
      %641 = vmatprep.mubr.bf16.mxu0 0
      %642 = vmatmul.mubr.bf16.gmra.mrb[0].mxu0 %v436
      %v643 = vpop.f32.mrb[0].mxu0
      %v644 = vadd.f32 %v547, %v643
      %v645 = vpop.f32.mrb[0].mxu0
      %v646 = vpop.f32.mrb[0].mxu0
      %v647 = vadd.f32 %v547, %v646
      %v648 = vpop.f32.mrb[0].mxu0
      %649 = vmatprep.mubr.bf16.mxu0 0
      %650 = vmatmul.mubr.bf16.gmra.mrb[0].mxu0 %v439
      %v651 = vpop.f32.mrb[0].mxu0
      %v652 = vadd.f32 %v547, %v651
      %v653 = vpop.f32.mrb[0].mxu0
      %v654 = vpop.f32.mrb[0].mxu0
      %v655 = vadd.f32 %v547, %v654
      %v656 = vpop.f32.mrb[0].mxu0
      %657 = vdwg.mxu0
      %vm658 = vcmp.gt.f32.partialorder %v476, 0.0
      %vm659 = vcmp.gt.f32.partialorder %v479, 0.0
      %vm660 = vcmp.gt.f32.partialorder %v484, 0.0
      %vm661 = vcmp.gt.f32.partialorder %v487, 0.0
      %vm662 = vcmp.gt.f32.partialorder %v492, 0.0
      %vm663 = vcmp.gt.f32.partialorder %v495, 0.0
      %vm664 = vcmp.gt.f32.partialorder %v500, 0.0
      %vm665 = vcmp.gt.f32.partialorder %v503, 0.0
      %vm666 = vcmp.gt.f32.partialorder %v508, 0.0
      %vm667 = vcmp.gt.f32.partialorder %v511, 0.0
      %vm668 = vcmp.gt.f32.partialorder %v516, 0.0
      %vm669 = vcmp.gt.f32.partialorder %v519, 0.0
      %vm670 = vcmp.gt.f32.partialorder %v524, 0.0
      %vm671 = vcmp.gt.f32.partialorder %v527, 0.0
      %vm672 = vcmp.gt.f32.partialorder %v532, 0.0
      %vm673 = vcmp.gt.f32.partialorder %v535, 0.0
      %v674 = vmul.f32 %v476, 0.01
      %v675 = vmul.f32 %v479, 0.01
      %v676 = vmul.f32 %v484, 0.01
      %v677 = vmul.f32 %v487, 0.01
      %v678 = vmul.f32 %v492, 0.01
      %v679 = vmul.f32 %v495, 0.01
      %v680 = vmul.f32 %v500, 0.01
      %v681 = vmul.f32 %v503, 0.01
      %v682 = vmul.f32 %v508, 0.01
      %v683 = vmul.f32 %v511, 0.01
      %v684 = vmul.f32 %v516, 0.01
      %v685 = vmul.f32 %v519, 0.01
      %v686 = vmul.f32 %v524, 0.01
      %v687 = vmul.f32 %v527, 0.01
      %v688 = vmul.f32 %v532, 0.01
      %v689 = vmul.f32 %v535, 0.01
      %v690 = vsel %vm658, %v476, %v674
      %v691 = vsel %vm659, %v479, %v675
      %v692 = vsel %vm660, %v484, %v676
      %v693 = vsel %vm661, %v487, %v677
      %v694 = vsel %vm662, %v492, %v678
      %v695 = vsel %vm663, %v495, %v679
      %v696 = vsel %vm664, %v500, %v680
      %v697 = vsel %vm665, %v503, %v681
      %v698 = vsel %vm666, %v508, %v682
      %v699 = vsel %vm667, %v511, %v683
      %v700 = vsel %vm668, %v516, %v684
      %v701 = vsel %vm669, %v519, %v685
      %v702 = vsel %vm670, %v524, %v686
      %v703 = vsel %vm671, %v527, %v687
      %v704 = vsel %vm672, %v532, %v688
      %v705 = vsel %vm673, %v535, %v689
      %v706 = vld [vmem:[%s5] sm:$0x1]
      %v708 = vlaneseq
      %v709 = vshrl.u32 %v708, 7
      %v710 = vsub.s32 0, %v709
      %v711 = vrot.slane %v706, %v710
      %v713 = vmul.f32 %v690, %v711
      %v714 = vmul.f32 %v691, %v711
      %v715 = vmul.f32 %v692, %v711
      %v716 = vmul.f32 %v693, %v711
      %v717 = vmul.f32 %v694, %v711
      %v718 = vmul.f32 %v695, %v711
      %v719 = vmul.f32 %v696, %v711
      %v720 = vmul.f32 %v697, %v711
      %v721 = vmul.f32 %v698, %v711
      %v722 = vmul.f32 %v699, %v711
      %v723 = vmul.f32 %v700, %v711
      %v724 = vmul.f32 %v701, %v711
      %v725 = vmul.f32 %v702, %v711
      %v726 = vmul.f32 %v703, %v711
      %v727 = vmul.f32 %v704, %v711
      %v728 = vmul.f32 %v705, %v711
      %v729 = vld [vmem:[%s6] sm:$0x1]
      %v731 = vlaneseq
      %v732 = vshrl.u32 %v731, 7
      %v733 = vsub.s32 0, %v732
      %v734 = vrot.slane %v729, %v733
      %v736 = vadd.f32 %v713, %v734
      %v737 = vadd.f32 %v714, %v734
      %v738 = vadd.f32 %v715, %v734
      %v739 = vadd.f32 %v716, %v734
      %v740 = vadd.f32 %v717, %v734
      %v741 = vadd.f32 %v718, %v734
      %v742 = vadd.f32 %v719, %v734
      %v743 = vadd.f32 %v720, %v734
      %v744 = vadd.f32 %v721, %v734
      %v745 = vadd.f32 %v722, %v734
      %v746 = vadd.f32 %v723, %v734
      %v747 = vadd.f32 %v724, %v734
      %v748 = vadd.f32 %v725, %v734
      %v749 = vadd.f32 %v726, %v734
      %v750 = vadd.f32 %v727, %v734
      %v751 = vadd.f32 %v728, %v734
      %vm752 = vcmp.gt.f32.partialorder %v596, 0.0
      %vm753 = vcmp.gt.f32.partialorder %v599, 0.0
      %vm754 = vcmp.gt.f32.partialorder %v604, 0.0
      %vm755 = vcmp.gt.f32.partialorder %v607, 0.0
      %vm756 = vcmp.gt.f32.partialorder %v612, 0.0
      %vm757 = vcmp.gt.f32.partialorder %v615, 0.0
      %vm758 = vcmp.gt.f32.partialorder %v620, 0.0
      %vm759 = vcmp.gt.f32.partialorder %v623, 0.0
      %vm760 = vcmp.gt.f32.partialorder %v628, 0.0
      %vm761 = vcmp.gt.f32.partialorder %v631, 0.0
      %vm762 = vcmp.gt.f32.partialorder %v636, 0.0
      %vm763 = vcmp.gt.f32.partialorder %v639, 0.0
      %vm764 = vcmp.gt.f32.partialorder %v644, 0.0
      %vm765 = vcmp.gt.f32.partialorder %v647, 0.0
      %vm766 = vcmp.gt.f32.partialorder %v652, 0.0
      %vm767 = vcmp.gt.f32.partialorder %v655, 0.0
      %v768 = vmul.f32 %v596, 0.01
      %v769 = vmul.f32 %v599, 0.01
      %v770 = vmul.f32 %v604, 0.01
      %v771 = vmul.f32 %v607, 0.01
      %v772 = vmul.f32 %v612, 0.01
      %v773 = vmul.f32 %v615, 0.01
      %v774 = vmul.f32 %v620, 0.01
      %v775 = vmul.f32 %v623, 0.01
      %v776 = vmul.f32 %v628, 0.01
      %v777 = vmul.f32 %v631, 0.01
      %v778 = vmul.f32 %v636, 0.01
      %v779 = vmul.f32 %v639, 0.01
      %v780 = vmul.f32 %v644, 0.01
      %v781 = vmul.f32 %v647, 0.01
      %v782 = vmul.f32 %v652, 0.01
      %v783 = vmul.f32 %v655, 0.01
      %v784 = vsel %vm752, %v596, %v768
      %v785 = vsel %vm753, %v599, %v769
      %v786 = vsel %vm754, %v604, %v770
      %v787 = vsel %vm755, %v607, %v771
      %v788 = vsel %vm756, %v612, %v772
      %v789 = vsel %vm757, %v615, %v773
      %v790 = vsel %vm758, %v620, %v774
      %v791 = vsel %vm759, %v623, %v775
      %v792 = vsel %vm760, %v628, %v776
      %v793 = vsel %vm761, %v631, %v777
      %v794 = vsel %vm762, %v636, %v778
      %v795 = vsel %vm763, %v639, %v779
      %v796 = vsel %vm764, %v644, %v780
      %v797 = vsel %vm765, %v647, %v781
      %v798 = vsel %vm766, %v652, %v782
      %v799 = vsel %vm767, %v655, %v783
      %v800 = vld [vmem:[%s7] sm:$0x1]
      %v802 = vlaneseq
      %v803 = vshrl.u32 %v802, 7
      %v804 = vsub.s32 0, %v803
      %v805 = vrot.slane %v800, %v804
      %v807 = vmul.f32 %v784, %v805
      %v808 = vmul.f32 %v785, %v805
      %v809 = vmul.f32 %v786, %v805
      %v810 = vmul.f32 %v787, %v805
      %v811 = vmul.f32 %v788, %v805
      %v812 = vmul.f32 %v789, %v805
      %v813 = vmul.f32 %v790, %v805
      %v814 = vmul.f32 %v791, %v805
      %v815 = vmul.f32 %v792, %v805
      %v816 = vmul.f32 %v793, %v805
      %v817 = vmul.f32 %v794, %v805
      %v818 = vmul.f32 %v795, %v805
      %v819 = vmul.f32 %v796, %v805
      %v820 = vmul.f32 %v797, %v805
      %v821 = vmul.f32 %v798, %v805
      %v822 = vmul.f32 %v799, %v805
      %v823 = vld [vmem:[%s8] sm:$0x1]
      %v825 = vlaneseq
      %v826 = vshrl.u32 %v825, 7
      %v827 = vsub.s32 0, %v826
      %v828 = vrot.slane %v823, %v827
      %v830 = vadd.f32 %v807, %v828
      %v831 = vadd.f32 %v808, %v828
      %v832 = vadd.f32 %v809, %v828
      %v833 = vadd.f32 %v810, %v828
      %v834 = vadd.f32 %v811, %v828
      %v835 = vadd.f32 %v812, %v828
      %v836 = vadd.f32 %v813, %v828
      %v837 = vadd.f32 %v814, %v828
      %v838 = vadd.f32 %v815, %v828
      %v839 = vadd.f32 %v816, %v828
      %v840 = vadd.f32 %v817, %v828
      %v841 = vadd.f32 %v818, %v828
      %v842 = vadd.f32 %v819, %v828
      %v843 = vadd.f32 %v820, %v828
      %v844 = vadd.f32 %v821, %v828
      %v845 = vadd.f32 %v822, %v828
      %v846 = vxor.u32 %v830, 2147483648
      %v847 = vxor.u32 %v831, 2147483648
      %v848 = vxor.u32 %v832, 2147483648
      %v849 = vxor.u32 %v833, 2147483648
      %v850 = vxor.u32 %v834, 2147483648
      %v851 = vxor.u32 %v835, 2147483648
      %v852 = vxor.u32 %v836, 2147483648
      %v853 = vxor.u32 %v837, 2147483648
      %v854 = vxor.u32 %v838, 2147483648
      %v855 = vxor.u32 %v839, 2147483648
      %v856 = vxor.u32 %v840, 2147483648
      %v857 = vxor.u32 %v841, 2147483648
      %v858 = vxor.u32 %v842, 2147483648
      %v859 = vxor.u32 %v843, 2147483648
      %v860 = vxor.u32 %v844, 2147483648
      %v861 = vxor.u32 %v845, 2147483648
      %v862 = vmul.f32 %v846, 1.442695
      %v863 = vpow.pop %v862
      %v864 = vmul.f32 %v847, 1.442695
      %v865 = vpow.pop %v864
      %v866 = vmul.f32 %v848, 1.442695
      %v867 = vpow.pop %v866
      %v868 = vmul.f32 %v849, 1.442695
      %v869 = vpow.pop %v868
      %v870 = vmul.f32 %v850, 1.442695
      %v871 = vpow.pop %v870
      %v872 = vmul.f32 %v851, 1.442695
      %v873 = vpow.pop %v872
      %v874 = vmul.f32 %v852, 1.442695
      %v875 = vpow.pop %v874
      %v876 = vmul.f32 %v853, 1.442695
      %v877 = vpow.pop %v876
      %v878 = vmul.f32 %v854, 1.442695
      %v879 = vpow.pop %v878
      %v880 = vmul.f32 %v855, 1.442695
      %v881 = vpow.pop %v880
      %v882 = vmul.f32 %v856, 1.442695
      %v883 = vpow.pop %v882
      %v884 = vmul.f32 %v857, 1.442695
      %v885 = vpow.pop %v884
      %v886 = vmul.f32 %v858, 1.442695
      %v887 = vpow.pop %v886
      %v888 = vmul.f32 %v859, 1.442695
      %v889 = vpow.pop %v888
      %v890 = vmul.f32 %v860, 1.442695
      %v891 = vpow.pop %v890
      %v892 = vmul.f32 %v861, 1.442695
      %v893 = vpow.pop %v892
      %v894 = vadd.f32 %v863, 1.0
      %v895 = vadd.f32 %v865, 1.0
      %v896 = vadd.f32 %v867, 1.0
      %v897 = vadd.f32 %v869, 1.0
      %v898 = vadd.f32 %v871, 1.0
      %v899 = vadd.f32 %v873, 1.0
      %v900 = vadd.f32 %v875, 1.0
      %v901 = vadd.f32 %v877, 1.0
      %v902 = vadd.f32 %v879, 1.0
      %v903 = vadd.f32 %v881, 1.0
      %v904 = vadd.f32 %v883, 1.0
      %v905 = vadd.f32 %v885, 1.0
      %v906 = vadd.f32 %v887, 1.0
      %v907 = vadd.f32 %v889, 1.0
      %v908 = vadd.f32 %v891, 1.0
      %v909 = vadd.f32 %v893, 1.0
      %v910 = vrcp.pop %v894
      %v911 = vmul.f32 1.0, %v910
      %v912 = vrcp.pop %v895
      %v913 = vmul.f32 1.0, %v912
      %v914 = vrcp.pop %v896
      %v915 = vmul.f32 1.0, %v914
      %v916 = vrcp.pop %v897
      %v917 = vmul.f32 1.0, %v916
      %v918 = vrcp.pop %v898
      %v919 = vmul.f32 1.0, %v918
      %v920 = vrcp.pop %v899
      %v921 = vmul.f32 1.0, %v920
      %v922 = vrcp.pop %v900
      %v923 = vmul.f32 1.0, %v922
      %v924 = vrcp.pop %v901
      %v925 = vmul.f32 1.0, %v924
      %v926 = vrcp.pop %v902
      %v927 = vmul.f32 1.0, %v926
      %v928 = vrcp.pop %v903
      %v929 = vmul.f32 1.0, %v928
      %v930 = vrcp.pop %v904
      %v931 = vmul.f32 1.0, %v930
      %v932 = vrcp.pop %v905
      %v933 = vmul.f32 1.0, %v932
      %v934 = vrcp.pop %v906
      %v935 = vmul.f32 1.0, %v934
      %v936 = vrcp.pop %v907
      %v937 = vmul.f32 1.0, %v936
      %v938 = vrcp.pop %v908
      %v939 = vmul.f32 1.0, %v938
      %v940 = vrcp.pop %v909
      %v941 = vmul.f32 1.0, %v940
      %v942 = vmul.f32 %v736, %v911
      %v943 = vmul.f32 %v737, %v913
      %v944 = vmul.f32 %v738, %v915
      %v945 = vmul.f32 %v739, %v917
      %v946 = vmul.f32 %v740, %v919
      %v947 = vmul.f32 %v741, %v921
      %v948 = vmul.f32 %v742, %v923
      %v949 = vmul.f32 %v743, %v925
      %v950 = vmul.f32 %v744, %v927
      %v951 = vmul.f32 %v745, %v929
      %v952 = vmul.f32 %v746, %v931
      %v953 = vmul.f32 %v747, %v933
      %v954 = vmul.f32 %v748, %v935
      %v955 = vmul.f32 %v749, %v937
      %v956 = vmul.f32 %v750, %v939
      %v957 = vmul.f32 %v751, %v941
      %vm958 = vcmask 130048
      %959 = vst.msk [vmem:[%s334] sm:$0xff] %vm958, %v942
      %960 = vst.msk [vmem:[%s334 + $0x8] sm:$0xff] %vm958, %v943
      %961 = vst.msk [vmem:[%s334 + $0x10] sm:$0xff] %vm958, %v944
      %962 = vst.msk [vmem:[%s334 + $0x18] sm:$0xff] %vm958, %v945
      %963 = vst.msk [vmem:[%s334 + $0x20] sm:$0xff] %vm958, %v946
      %964 = vst.msk [vmem:[%s334 + $0x28] sm:$0xff] %vm958, %v947
      %965 = vst.msk [vmem:[%s334 + $0x30] sm:$0xff] %vm958, %v948
      %966 = vst.msk [vmem:[%s334 + $0x38] sm:$0xff] %vm958, %v949
      %967 = vst.msk [vmem:[%s334 + $0x40] sm:$0xff] %vm958, %v950
      %968 = vst.msk [vmem:[%s334 + $0x48] sm:$0xff] %vm958, %v951
      %969 = vst.msk [vmem:[%s334 + $0x50] sm:$0xff] %vm958, %v952
      %970 = vst.msk [vmem:[%s334 + $0x58] sm:$0xff] %vm958, %v953
      %971 = vst.msk [vmem:[%s334 + $0x60] sm:$0xff] %vm958, %v954
      %972 = vst.msk [vmem:[%s334 + $0x68] sm:$0xff] %vm958, %v955
      %973 = vst.msk [vmem:[%s334 + $0x70] sm:$0xff] %vm958, %v956
      %974 = vst.msk [vmem:[%s334 + $0x78] sm:$0xff] %vm958, %v957
      %s975 = smul.u32 16, %s20
      %p976 = scmp.lt.s32.totalorder %s975, 31
      %s977 = scalar_select %p976, %s975, 31
      %s978 = smul.addr %s977, 8
      %s979 = scalar_lea.vmem %s9, %s978
      // Predicated region
      $region57: #{tpu_custom_call.1} parent=55 // pred_check
        %p980 = pneg %p232
      $region58: #{tpu_custom_call.1} parent=55 // pred_check_branch
        %982 = sbr.rel (%p980) target = $region60
      $region59: #{tpu_custom_call.1} parent=55 // pred_region
        %s983 = smul.u32 16, %s20
      $region60: #{tpu_custom_call.1} parent=55 // pred_fallthru
        _
    $region56: #{tpu_custom_call.1} parent=5 // pred_fallthru
      _
    %p984 = scmp.le.s32.totalorder 2, %s15
    // Predicated region
    $region61: #{tpu_custom_call.1} parent=5 // pred_check
      %p985 = pneg %p984
    $region62: #{tpu_custom_call.1} parent=5 // pred_check_branch
      %987 = sbr.rel (%p985) target = $region64
    $region63: #{tpu_custom_call.1} parent=5 // pred_region
      %s988 = ssub.s32 %s15, 2
      // Predicated region
      $region65: #{tpu_custom_call.1} parent=63 // pred_check
        %p989 = pneg %p238
      $region66: #{tpu_custom_call.1} parent=63 // pred_check_branch
        %991 = sbr.rel (%p989) target = $region68
      $region67: #{tpu_custom_call.1} parent=63 // pred_region
        %s992 = smul.u32 16, %s21
        %p993 = scmp.lt.s32.totalorder %s992, 31
        %s994 = scalar_select %p993, %s992, 31
        %s995 = smul.addr %s994, 8
        %s996 = scalar_lea.vmem %s9, %s995
      $region68: #{tpu_custom_call.1} parent=63 // pred_fallthru
        _
    $region64: #{tpu_custom_call.1} parent=5 // pred_fallthru
      _
  $region6: #{tpu_custom_call.1} parent=0 // loop_footer
    %s19 = sadd.s32 1, %s15
  $region7: #{tpu_custom_call.1} parent=0 // loop_footer_branch
    %14 = sbr.rel target = $region3
  $region8: #{tpu_custom_call.1} parent=0 // loop_exit
    _

</llo_original>
